<compile_context>
chip_gen: v7x
topology: tpu7x:2x2x1
jax: 0.10.0
libtpu: 0.0.40
codegen_flags: <defaults>
</compile_context>

<pallas_src>
import functools

import jax
import jax.numpy as jnp
from jax.experimental import pallas as pl
from jax.experimental.pallas import tpu as pltpu

# --- config (the reference module references config.VALUES_PER_POINT) ---
VALUES_PER_POINT = 4
PATCH_SIZE = 8
EMBEDDING_DIM = 4
IN_FEATURES = VALUES_PER_POINT * PATCH_SIZE      # K = 32

# PACK patches per packed row: input width PACK*K = 1024, output width PACK*N = 128
# -> both are multiples of the 128-lane vreg width (lane-dense loads and stores).
PACK = 32
TILE_M_MAX = 2048   # packed rows per grid step: 2*(8 MiB in + 1 MiB out) + ~0.5 MiB W/bias
                    # ≈ 19 MiB, under v7x's 64 MiB physical VMEM with headroom.


def _round_up(x, m):
    return ((x + m - 1) // m) * m


def pack_params(weight, bias):
    """One-time parameter prep (call outside the per-step hot path).

    weight: (EMBEDDING_DIM, IN_FEATURES)  -- PyTorch nn.Linear layout (N, K)
    bias:   (EMBEDDING_DIM,)
    Returns:
      w_packed: (PACK*K, PACK*N) block-diagonal weight (each block = weight.T), bf16
      b_packed: (1, PACK*N) bias tiled per packed patch, f32 (bias add stays f32)
    """
    w_t = weight.T.astype(jnp.float32)                             # (K, N)
    w_packed = jnp.kron(jnp.eye(PACK, dtype=jnp.float32), w_t)     # (PACK*K, PACK*N)
    w_packed = w_packed.astype(jnp.bfloat16)                       # MXU operand dtype
    b_packed = jnp.tile(bias.astype(jnp.float32), PACK).reshape(1, -1)
    return w_packed, b_packed


def _embedding_kernel(x_ref, w_ref, b_ref, o_ref):
    # x_ref: (tile_m, PACK*K)  lane-dense packed activations (caller dtype)
    # w_ref: (PACK*K, PACK*N)  block-diagonal bf16 weight (resident across grid steps)
    # b_ref: (1, PACK*N)       tiled f32 bias
    # o_ref: (tile_m, PACK*N)  lane-dense output
    # Cast to bf16 after the VMEM load so HBM traffic keeps the caller's dtype
    # but the MXU runs at full bf16 rate; accumulate in f32.
    x_bf16 = x_ref[...].astype(jnp.bfloat16)
    acc = jnp.dot(x_bf16, w_ref[...], preferred_element_type=jnp.float32)
    o_ref[...] = (acc + b_ref[...]).astype(o_ref.dtype)


@functools.partial(jax.jit, static_argnames=("tile_m",))
def trajectory_embedding(trajectory, w_packed, b_packed, *, tile_m=None):
    """trajectory: (..., IN_FEATURES)  ->  (..., EMBEDDING_DIM)."""
    lead = trajectory.shape[:-1]
    k = trajectory.shape[-1]
    n = w_packed.shape[-1] // PACK

    x2d = trajectory.reshape(-1, k)                 # (M, K)
    m = x2d.shape[0]

    rows = -(-m // PACK)                            # packed rows needed
    pad = rows * PACK - m                           # <= PACK-1 patch rows
    if pad:
        x2d = jnp.pad(x2d, ((0, pad), (0, 0)))      # small pad to a PACK multiple only
    x_packed = x2d.reshape(rows, PACK * k)          # (rows, PACK*K)

    if tile_m is None:
        # Guarantee >= 2 grid steps when possible so the "parallel" M axis can
        # shard across both v7x TensorCores; keep the tile a multiple of 8.
        tile_m = min(TILE_M_MAX, _round_up(-(-rows // 2), 8))
    else:
        tile_m = max(8, _round_up(int(tile_m), 8))  # f32 sublane constraint

    grid_m = pl.cdiv(rows, tile_m)                  # ragged last tile -> Pallas masks it

    itemsize = jnp.dtype(trajectory.dtype).itemsize
    cost = pl.CostEstimate(
        flops=2 * m * k * n,                        # useful flops, not the 32x block-diag count
        transcendentals=0,
        bytes_accessed=(rows * PACK * k * itemsize
                        + w_packed.size * jnp.dtype(w_packed.dtype).itemsize
                        + b_packed.size * jnp.dtype(b_packed.dtype).itemsize
                        + rows * PACK * n * itemsize),
    )

    out = pl.pallas_call(
        _embedding_kernel,
        out_shape=jax.ShapeDtypeStruct((rows, PACK * n), trajectory.dtype),
        grid_spec=pltpu.PrefetchScalarGridSpec(
            num_scalar_prefetch=0,
            grid=(grid_m,),
            in_specs=[
                pl.BlockSpec((tile_m, PACK * k), lambda i: (i, 0)),
                pl.BlockSpec((PACK * k, PACK * n), lambda i: (0, 0)),
                pl.BlockSpec((1, PACK * n), lambda i: (0, 0)),
            ],
            out_specs=pl.BlockSpec((tile_m, PACK * n), lambda i: (i, 0)),
        ),
        compiler_params=pltpu.CompilerParams(
            dimension_semantics=("parallel",),
            vmem_limit_bytes=48 * 1024 * 1024,
        ),
        cost_estimate=cost,
    )(x_packed, w_packed, b_packed)

    out = out.reshape(rows * PACK, n)[:m]           # drop padded patches
    return out.reshape(*lead, n)


def reference(trajectory, weight, bias):
    return jnp.einsum("...k,nk->...n", trajectory, weight) + bias


if __name__ == "__main__":
    key = jax.random.PRNGKey(0)
    k_x, k_w, k_b, k_x2 = jax.random.split(key, 4)

    # Deterministic "nn.Linear"-style init: U(-1/sqrt(fan_in), 1/sqrt(fan_in))
    bound = 1.0 / (IN_FEATURES ** 0.5)
    weight = jax.random.uniform(
        k_w, (EMBEDDING_DIM, IN_FEATURES), jnp.float32, -bound, bound
    )
    bias = jax.random.uniform(k_b, (EMBEDDING_DIM,), jnp.float32, -bound, bound)

    # Parameter packing (and the bf16 weight cast) happens once, outside the hot path.
    w_packed, b_packed = pack_params(weight, bias)

    # Small shape implied by the module: batch=2, seq=8 patches of 4*8=32 values.
    batch, seq = 2, 8
    trajectory = jax.random.normal(k_x, (batch, seq, IN_FEATURES), jnp.float32)
    out = jax.block_until_ready(trajectory_embedding(trajectory, w_packed, b_packed))
    ref = reference(trajectory, weight, bias)
    assert out.shape == (batch, seq, EMBEDDING_DIM)
    # bf16 MXU operands with f32 accumulation -> looser tolerance vs f32 reference.
    assert jnp.allclose(out, ref, atol=2e-2, rtol=2e-2)

    # Second test: patch count not a multiple of PACK + multi-step grid with a
    # ragged last tile (4*509 = 2036 patches -> 64 packed rows, tile_m=24 -> grid of 3).
    traj2 = jax.random.normal(k_x2, (4, 509, IN_FEATURES), jnp.float32)
    out2 = jax.block_until_ready(
        trajectory_embedding(traj2, w_packed, b_packed, tile_m=24)
    )
    ref2 = reference(traj2, weight, bias)
    assert out2.shape == (4, 509, EMBEDDING_DIM)
    assert jnp.allclose(out2, ref2, atol=2e-2, rtol=2e-2)

    print("KERNEL_OK")
</pallas_src>

<mosaic_0001>
module attributes {stable_mosaic.version = 11 : i64} {
  func.func @_embedding_kernel(%arg0: i32, %arg1: memref<8x1024xf32, #tpu.memory_space<vmem>>, %arg2: memref<1024x128xbf16, #tpu.memory_space<vmem>>, %arg3: memref<1x128xf32, #tpu.memory_space<vmem>>, %arg4: memref<8x128xf32, #tpu.memory_space<vmem>>) attributes {dimension_semantics = [#tpu.dimension_semantics<parallel>], iteration_bounds = array<i64: 1>, scalar_prefetch = 0 : i64, scratch_operands = 0 : i64, tpu.core_type = #tpu.core_type<tc>, window_params = [{transform_indices = @transform_0, window_bounds = array<i64: 8, 1024>}, {pipeline_mode = #tpu.pipeline_mode<synchronous>, transform_indices = @transform_1, window_bounds = array<i64: 1024, 128>}, {pipeline_mode = #tpu.pipeline_mode<synchronous>, transform_indices = @transform_2, window_bounds = array<i64: 1, 128>}, {transform_indices = @transform_3, window_bounds = array<i64: 8, 128>}]} {
    %c0 = arith.constant 0 : index
    %c0_0 = arith.constant 0 : index
    %0 = vector.load %arg1[%c0, %c0_0] : memref<8x1024xf32, #tpu.memory_space<vmem>>, vector<8x1024xf32>
    %1 = arith.truncf %0 : vector<8x1024xf32> to vector<8x1024xbf16>
    %c0_1 = arith.constant 0 : index
    %c0_2 = arith.constant 0 : index
    %2 = vector.load %arg2[%c0_1, %c0_2] : memref<1024x128xbf16, #tpu.memory_space<vmem>>, vector<1024x128xbf16>
    %cst = arith.constant dense<0.000000e+00> : vector<8x128xf32>
    %3 = tpu.matmul %1, %2, %cst {dimension_numbers = #tpu.dot_dimension_numbers<[1], [0], [0], [1], [0, 0, 1, 1], [], []>} : vector<8x1024xbf16>, vector<1024x128xbf16>, vector<8x128xf32> -> vector<8x128xf32>
    %c0_3 = arith.constant 0 : index
    %c0_4 = arith.constant 0 : index
    %4 = vector.load %arg3[%c0_3, %c0_4] : memref<1x128xf32, #tpu.memory_space<vmem>>, vector<1x128xf32>
    %5 = vector.broadcast %4 : vector<1x128xf32> to vector<8x128xf32>
    %6 = arith.addf %3, %5 : vector<8x128xf32>
    %c0_5 = arith.constant 0 : index
    %c0_6 = arith.constant 0 : index
    %7 = vector.load %arg4[%c0_5, %c0_6] : memref<8x128xf32, #tpu.memory_space<vmem>>, vector<8x128xf32>
    tpu.vector_store %arg4[%c0_5, %c0_6], %6 {strides = array<i32>} : memref<8x128xf32, #tpu.memory_space<vmem>>, vector<8x128xf32>,
    return
  }
  func.func @transform_0(%arg0: i32) -> (i32, i32) {
    %c0_i32 = arith.constant 0 : i32
    %c0_i32_0 = arith.constant 0 : i32
    return %arg0, %c0_i32 : i32, i32
  }
  func.func @transform_1(%arg0: i32) -> (i32, i32) {
    %c0_i32 = arith.constant 0 : i32
    %c0_i32_0 = arith.constant 0 : i32
    %c0_i32_1 = arith.constant 0 : i32
    return %c0_i32, %c0_i32_0 : i32, i32
  }
  func.func @transform_2(%arg0: i32) -> (i32, i32) {
    %c0_i32 = arith.constant 0 : i32
    %c0_i32_0 = arith.constant 0 : i32
    %c0_i32_1 = arith.constant 0 : i32
    return %c0_i32, %c0_i32_0 : i32, i32
  }
  func.func @transform_3(%arg0: i32) -> (i32, i32) {
    %c0_i32 = arith.constant 0 : i32
    %c0_i32_0 = arith.constant 0 : i32
    return %arg0, %c0_i32 : i32, i32
  }
}

</mosaic_0001>

<llo_original>
// kernel: trajectory_embedding.1
$region0: #{trajectory_embedding.1}
  #allocation0 [shape = 'u32[]', space=smem, size = 0x4, offset = 0x4, fixed_abs, tag = 'smem constant byte address 0x4 - core index']
  #allocation1 [shape = 'u32[144,128]{1,0:T(1,128)}', space=vmem, size = 0x12000, scoped, tag = 'internal scratch']
  %s0 = inlined_call_operand.vmem [shape: f32[1,1024], index: 0, kind: input, shape index: {}]
  %s1 = inlined_call_operand.hbm [shape: bf16[1024,128], index: 1, kind: input, shape index: {}]
  %s2 = inlined_call_operand.vmem [shape: f32[1,128], index: 2, kind: input, shape index: {}]
  %s3 = inlined_call_operand.vmem [shape: f32[1,128], index: 3, kind: output, shape index: {}]
  %s4 = sld [smem:[#allocation0]]
  $region56: #{trajectory_embedding.1} parent=0
    _
  %s6 = ssub.s32 1, %s4
  %s7 = scalar_select 0, %s6, %s4
  $region1: #{trajectory_embedding.1} parent=0
    #allocation2 [shape = 'u8[262144]{0}', space=vmem, size = 0x40000, scoped, tag = 'input window, operand 1, single buffered']
    #allocation3 [shape = 's32[1]{0}', space=sflag, size = 0x4, scoped, tag = 'scoped memory for trajectory_embedding.1']
    #allocation4 [shape = 'u8[4096]{0}', space=vmem, size = 0x1000, scoped, tag = 'output window, operand 0, single buffered']
    %8 = vsyncpa [#allocation3], 0
    // Predicated region
    $region2: #{trajectory_embedding.1} parent=1 // pred_check
      _
    $region3: #{trajectory_embedding.1} parent=1 // pred_check_branch
      %10 = sbr.rel (0) target = $region5
    $region4: #{trajectory_embedding.1} parent=1 // pred_region
      _
    $region5: #{trajectory_embedding.1} parent=1 // pred_fallthru
      _
    // Predicated region
    $region6: #{trajectory_embedding.1} parent=1 // pred_check
      _
    $region7: #{trajectory_embedding.1} parent=1 // pred_check_branch
      %12 = sbr.rel (0) target = $region9
    $region8: #{trajectory_embedding.1} parent=1 // pred_region
      %s14 = ssub.s32 8192, 8192
      %15 = vsyncadd [#allocation3], %s14
      %s16 = sshll.u32 [#allocation2], 4
      %s17 = int_to_ptr.vmem [resolvable:$true] %s16
      %22 = dma.hbm_to_vmem [thread:$0]  %s1, 8192, %s17, [#allocation3], 64, 64, 4
    $region9: #{trajectory_embedding.1} parent=1 // pred_fallthru
      _
    // Predicated region
    $region10: #{trajectory_embedding.1} parent=1 // pred_check
      _
    $region11: #{trajectory_embedding.1} parent=1 // pred_check_branch
      %24 = sbr.rel (0) target = $region13
    $region12: #{trajectory_embedding.1} parent=1 // pred_region
      _
    $region13: #{trajectory_embedding.1} parent=1 // pred_fallthru
      _
    // Predicated region
    $region14: #{trajectory_embedding.1} parent=1 // pred_check
      _
    $region15: #{trajectory_embedding.1} parent=1 // pred_check_branch
      %26 = sbr.rel (0) target = $region17
    $region16: #{trajectory_embedding.1} parent=1 // pred_region
      %27 = dma.done [#allocation3], 8192
    $region17: #{trajectory_embedding.1} parent=1 // pred_fallthru
      _
    %v29 = vld [vmem:[%s0] sm:$0xff]
    %v30 = vld [vmem:[%s0 + $0x8] sm:$0xff]
    %v31 = vld [vmem:[%s0 + $0x10] sm:$0xff]
    %v32 = vld [vmem:[%s0 + $0x18] sm:$0xff]
    %v33 = vld [vmem:[%s0 + $0x20] sm:$0xff]
    %v34 = vld [vmem:[%s0 + $0x28] sm:$0xff]
    %v35 = vld [vmem:[%s0 + $0x30] sm:$0xff]
    %v36 = vld [vmem:[%s0 + $0x38] sm:$0xff]
    %v45 = vcombine.low %v29, %v30
    %v46 = vcombine.high %v29, %v30
    %v47 = vcombine.low %v31, %v32
    %v48 = vcombine.high %v31, %v32
    %v49 = vcombine.low %v33, %v34
    %v50 = vcombine.high %v33, %v34
    %v51 = vcombine.low %v35, %v36
    %v52 = vcombine.high %v35, %v36
    %v54 = vunpack.c.l.s4 1966171168
    %v55 = vunpack.c.0.s8 %v54
    %v56 = vlaneseq
    %v57 = vshrl.u32 %v56, 7
    %v58 = vsub.s32 %v55, %v57
    %v59 = vrot.slane %v45, %v58
    %v61 = vunpack.c.l.s4 1966171168
    %v62 = vunpack.c.0.s8 %v61
    %v63 = vlaneseq
    %v64 = vshrl.u32 %v63, 7
    %v65 = vsub.s32 %v62, %v64
    %v66 = vrot.slane %v46, %v65
    %v68 = vunpack.c.l.s4 1966171168
    %v69 = vunpack.c.0.s8 %v68
    %v70 = vlaneseq
    %v71 = vshrl.u32 %v70, 7
    %v72 = vsub.s32 %v69, %v71
    %v73 = vrot.slane %v47, %v72
    %v75 = vunpack.c.l.s4 1966171168
    %v76 = vunpack.c.0.s8 %v75
    %v77 = vlaneseq
    %v78 = vshrl.u32 %v77, 7
    %v79 = vsub.s32 %v76, %v78
    %v80 = vrot.slane %v48, %v79
    %v82 = vunpack.c.l.s4 1966171168
    %v83 = vunpack.c.0.s8 %v82
    %v84 = vlaneseq
    %v85 = vshrl.u32 %v84, 7
    %v86 = vsub.s32 %v83, %v85
    %v87 = vrot.slane %v49, %v86
    %v89 = vunpack.c.l.s4 1966171168
    %v90 = vunpack.c.0.s8 %v89
    %v91 = vlaneseq
    %v92 = vshrl.u32 %v91, 7
    %v93 = vsub.s32 %v90, %v92
    %v94 = vrot.slane %v50, %v93
    %v96 = vunpack.c.l.s4 1966171168
    %v97 = vunpack.c.0.s8 %v96
    %v98 = vlaneseq
    %v99 = vshrl.u32 %v98, 7
    %v100 = vsub.s32 %v97, %v99
    %v101 = vrot.slane %v51, %v100
    %v103 = vunpack.c.l.s4 1966171168
    %v104 = vunpack.c.0.s8 %v103
    %v105 = vlaneseq
    %v106 = vshrl.u32 %v105, 7
    %v107 = vsub.s32 %v104, %v106
    %v108 = vrot.slane %v52, %v107
    %v109 = vcombine.low %v59, %v73
    %v110 = vcombine.high %v59, %v73
    %v111 = vcombine.low %v66, %v80
    %v112 = vcombine.high %v66, %v80
    %v113 = vcombine.low %v87, %v101
    %v114 = vcombine.high %v87, %v101
    %v115 = vcombine.low %v94, %v108
    %v116 = vcombine.high %v94, %v108
    %v118 = vunpack.c.l.s4 1966171168
    %v119 = vunpack.c.0.s8 %v118
    %v120 = vlaneseq
    %v121 = vshrl.u32 %v120, 7
    %v122 = vsub.s32 %v119, %v121
    %v123 = vrot.slane %v109, %v122
    %v125 = vunpack.c.l.s4 1966171168
    %v126 = vunpack.c.0.s8 %v125
    %v127 = vlaneseq
    %v128 = vshrl.u32 %v127, 7
    %v129 = vsub.s32 %v126, %v128
    %v130 = vrot.slane %v111, %v129
    %v132 = vunpack.c.l.s4 1966171168
    %v133 = vunpack.c.0.s8 %v132
    %v134 = vlaneseq
    %v135 = vshrl.u32 %v134, 7
    %v136 = vsub.s32 %v133, %v135
    %v137 = vrot.slane %v110, %v136
    %v139 = vunpack.c.l.s4 1966171168
    %v140 = vunpack.c.0.s8 %v139
    %v141 = vlaneseq
    %v142 = vshrl.u32 %v141, 7
    %v143 = vsub.s32 %v140, %v142
    %v144 = vrot.slane %v112, %v143
    %v146 = vunpack.c.l.s4 1966171168
    %v147 = vunpack.c.0.s8 %v146
    %v148 = vlaneseq
    %v149 = vshrl.u32 %v148, 7
    %v150 = vsub.s32 %v147, %v149
    %v151 = vrot.slane %v113, %v150
    %v153 = vunpack.c.l.s4 1966171168
    %v154 = vunpack.c.0.s8 %v153
    %v155 = vlaneseq
    %v156 = vshrl.u32 %v155, 7
    %v157 = vsub.s32 %v154, %v156
    %v158 = vrot.slane %v115, %v157
    %v160 = vunpack.c.l.s4 1966171168
    %v161 = vunpack.c.0.s8 %v160
    %v162 = vlaneseq
    %v163 = vshrl.u32 %v162, 7
    %v164 = vsub.s32 %v161, %v163
    %v165 = vrot.slane %v114, %v164
    %v167 = vunpack.c.l.s4 1966171168
    %v168 = vunpack.c.0.s8 %v167
    %v169 = vlaneseq
    %v170 = vshrl.u32 %v169, 7
    %v171 = vsub.s32 %v168, %v170
    %v172 = vrot.slane %v116, %v171
    %v173 = vcombine.low %v123, %v151
    %v174 = vcombine.high %v123, %v151
    %v175 = vcombine.low %v130, %v158
    %v176 = vcombine.high %v130, %v158
    %v177 = vcombine.low %v137, %v165
    %v178 = vcombine.high %v137, %v165
    %v179 = vcombine.low %v144, %v172
    %v180 = vcombine.high %v144, %v172
    %v189 = vpack.c.bf16 %v173, %v173
    %v190 = vpack.c.bf16 %v177, %v177
    %v191 = vpack.c.bf16 %v174, %v174
    %v192 = vpack.c.bf16 %v178, %v178
    %v193 = vpack.c.bf16 %v175, %v175
    %v194 = vpack.c.bf16 %v179, %v179
    %v195 = vpack.c.bf16 %v176, %v176
    %v196 = vpack.c.bf16 %v180, %v180
    %v197 = vld [vmem:[#allocation2] sm:$0xf]
    %v198 = vld [vmem:[#allocation2 + $0x4] sm:$0xf]
    %v199 = vld [vmem:[#allocation2 + $0x8] sm:$0xf]
    %v200 = vld [vmem:[#allocation2 + $0xc] sm:$0xf]
    %v201 = vld [vmem:[#allocation2 + $0x10] sm:$0xf]
    %v202 = vld [vmem:[#allocation2 + $0x14] sm:$0xf]
    %v203 = vld [vmem:[#allocation2 + $0x18] sm:$0xf]
    %v204 = vld [vmem:[#allocation2 + $0x1c] sm:$0xf]
    %v205 = vld [vmem:[#allocation2 + $0x20] sm:$0xf]
    %v206 = vld [vmem:[#allocation2 + $0x24] sm:$0xf]
    %v207 = vld [vmem:[#allocation2 + $0x28] sm:$0xf]
    %v208 = vld [vmem:[#allocation2 + $0x2c] sm:$0xf]
    %v209 = vld [vmem:[#allocation2 + $0x30] sm:$0xf]
    %v210 = vld [vmem:[#allocation2 + $0x34] sm:$0xf]
    %v211 = vld [vmem:[#allocation2 + $0x38] sm:$0xf]
    %v212 = vld [vmem:[#allocation2 + $0x3c] sm:$0xf]
    %v213 = vld [vmem:[#allocation2 + $0x40] sm:$0xf]
    %v214 = vld [vmem:[#allocation2 + $0x44] sm:$0xf]
    %v215 = vld [vmem:[#allocation2 + $0x48] sm:$0xf]
    %v216 = vld [vmem:[#allocation2 + $0x4c] sm:$0xf]
    %v217 = vld [vmem:[#allocation2 + $0x50] sm:$0xf]
    %v218 = vld [vmem:[#allocation2 + $0x54] sm:$0xf]
    %v219 = vld [vmem:[#allocation2 + $0x58] sm:$0xf]
    %v220 = vld [vmem:[#allocation2 + $0x5c] sm:$0xf]
    %v221 = vld [vmem:[#allocation2 + $0x60] sm:$0xf]
    %v222 = vld [vmem:[#allocation2 + $0x64] sm:$0xf]
    %v223 = vld [vmem:[#allocation2 + $0x68] sm:$0xf]
    %v224 = vld [vmem:[#allocation2 + $0x6c] sm:$0xf]
    %v225 = vld [vmem:[#allocation2 + $0x70] sm:$0xf]
    %v226 = vld [vmem:[#allocation2 + $0x74] sm:$0xf]
    %v227 = vld [vmem:[#allocation2 + $0x78] sm:$0xf]
    %v228 = vld [vmem:[#allocation2 + $0x7c] sm:$0xf]
    %v229 = vld [vmem:[#allocation2 + $0x80] sm:$0xf]
    %v230 = vld [vmem:[#allocation2 + $0x84] sm:$0xf]
    %v231 = vld [vmem:[#allocation2 + $0x88] sm:$0xf]
    %v232 = vld [vmem:[#allocation2 + $0x8c] sm:$0xf]
    %v233 = vld [vmem:[#allocation2 + $0x90] sm:$0xf]
    %v234 = vld [vmem:[#allocation2 + $0x94] sm:$0xf]
    %v235 = vld [vmem:[#allocation2 + $0x98] sm:$0xf]
    %v236 = vld [vmem:[#allocation2 + $0x9c] sm:$0xf]
    %v237 = vld [vmem:[#allocation2 + $0xa0] sm:$0xf]
    %v238 = vld [vmem:[#allocation2 + $0xa4] sm:$0xf]
    %v239 = vld [vmem:[#allocation2 + $0xa8] sm:$0xf]
    %v240 = vld [vmem:[#allocation2 + $0xac] sm:$0xf]
    %v241 = vld [vmem:[#allocation2 + $0xb0] sm:$0xf]
    %v242 = vld [vmem:[#allocation2 + $0xb4] sm:$0xf]
    %v243 = vld [vmem:[#allocation2 + $0xb8] sm:$0xf]
    %v244 = vld [vmem:[#allocation2 + $0xbc] sm:$0xf]
    %v245 = vld [vmem:[#allocation2 + $0xc0] sm:$0xf]
    %v246 = vld [vmem:[#allocation2 + $0xc4] sm:$0xf]
    %v247 = vld [vmem:[#allocation2 + $0xc8] sm:$0xf]
    %v248 = vld [vmem:[#allocation2 + $0xcc] sm:$0xf]
    %v249 = vld [vmem:[#allocation2 + $0xd0] sm:$0xf]
    %v250 = vld [vmem:[#allocation2 + $0xd4] sm:$0xf]
    %v251 = vld [vmem:[#allocation2 + $0xd8] sm:$0xf]
    %v252 = vld [vmem:[#allocation2 + $0xdc] sm:$0xf]
    %v253 = vld [vmem:[#allocation2 + $0xe0] sm:$0xf]
    %v254 = vld [vmem:[#allocation2 + $0xe4] sm:$0xf]
    %v255 = vld [vmem:[#allocation2 + $0xe8] sm:$0xf]
    %v256 = vld [vmem:[#allocation2 + $0xec] sm:$0xf]
    %v257 = vld [vmem:[#allocation2 + $0xf0] sm:$0xf]
    %v258 = vld [vmem:[#allocation2 + $0xf4] sm:$0xf]
    %v259 = vld [vmem:[#allocation2 + $0xf8] sm:$0xf]
    %v260 = vld [vmem:[#allocation2 + $0xfc] sm:$0xf]
    %v261 = vld [vmem:[#allocation2 + $0x100] sm:$0xf]
    %v262 = vld [vmem:[#allocation2 + $0x104] sm:$0xf]
    %v263 = vld [vmem:[#allocation2 + $0x108] sm:$0xf]
    %v264 = vld [vmem:[#allocation2 + $0x10c] sm:$0xf]
    %v265 = vld [vmem:[#allocation2 + $0x110] sm:$0xf]
    %v266 = vld [vmem:[#allocation2 + $0x114] sm:$0xf]
    %v267 = vld [vmem:[#allocation2 + $0x118] sm:$0xf]
    %v268 = vld [vmem:[#allocation2 + $0x11c] sm:$0xf]
    %v269 = vld [vmem:[#allocation2 + $0x120] sm:$0xf]
    %v270 = vld [vmem:[#allocation2 + $0x124] sm:$0xf]
    %v271 = vld [vmem:[#allocation2 + $0x128] sm:$0xf]
    %v272 = vld [vmem:[#allocation2 + $0x12c] sm:$0xf]
    %v273 = vld [vmem:[#allocation2 + $0x130] sm:$0xf]
    %v274 = vld [vmem:[#allocation2 + $0x134] sm:$0xf]
    %v275 = vld [vmem:[#allocation2 + $0x138] sm:$0xf]
    %v276 = vld [vmem:[#allocation2 + $0x13c] sm:$0xf]
    %v277 = vld [vmem:[#allocation2 + $0x140] sm:$0xf]
    %v278 = vld [vmem:[#allocation2 + $0x144] sm:$0xf]
    %v279 = vld [vmem:[#allocation2 + $0x148] sm:$0xf]
    %v280 = vld [vmem:[#allocation2 + $0x14c] sm:$0xf]
    %v281 = vld [vmem:[#allocation2 + $0x150] sm:$0xf]
    %v282 = vld [vmem:[#allocation2 + $0x154] sm:$0xf]
    %v283 = vld [vmem:[#allocation2 + $0x158] sm:$0xf]
    %v284 = vld [vmem:[#allocation2 + $0x15c] sm:$0xf]
    %v285 = vld [vmem:[#allocation2 + $0x160] sm:$0xf]
    %v286 = vld [vmem:[#allocation2 + $0x164] sm:$0xf]
    %v287 = vld [vmem:[#allocation2 + $0x168] sm:$0xf]
    %v288 = vld [vmem:[#allocation2 + $0x16c] sm:$0xf]
    %v289 = vld [vmem:[#allocation2 + $0x170] sm:$0xf]
    %v290 = vld [vmem:[#allocation2 + $0x174] sm:$0xf]
    %v291 = vld [vmem:[#allocation2 + $0x178] sm:$0xf]
    %v292 = vld [vmem:[#allocation2 + $0x17c] sm:$0xf]
    %v293 = vld [vmem:[#allocation2 + $0x180] sm:$0xf]
    %v294 = vld [vmem:[#allocation2 + $0x184] sm:$0xf]
    %v295 = vld [vmem:[#allocation2 + $0x188] sm:$0xf]
    %v296 = vld [vmem:[#allocation2 + $0x18c] sm:$0xf]
    %v297 = vld [vmem:[#allocation2 + $0x190] sm:$0xf]
    %v298 = vld [vmem:[#allocation2 + $0x194] sm:$0xf]
    %v299 = vld [vmem:[#allocation2 + $0x198] sm:$0xf]
    %v300 = vld [vmem:[#allocation2 + $0x19c] sm:$0xf]
    %v301 = vld [vmem:[#allocation2 + $0x1a0] sm:$0xf]
    %v302 = vld [vmem:[#allocation2 + $0x1a4] sm:$0xf]
    %v303 = vld [vmem:[#allocation2 + $0x1a8] sm:$0xf]
    %v304 = vld [vmem:[#allocation2 + $0x1ac] sm:$0xf]
    %v305 = vld [vmem:[#allocation2 + $0x1b0] sm:$0xf]
    %v306 = vld [vmem:[#allocation2 + $0x1b4] sm:$0xf]
    %v307 = vld [vmem:[#allocation2 + $0x1b8] sm:$0xf]
    %v308 = vld [vmem:[#allocation2 + $0x1bc] sm:$0xf]
    %v309 = vld [vmem:[#allocation2 + $0x1c0] sm:$0xf]
    %v310 = vld [vmem:[#allocation2 + $0x1c4] sm:$0xf]
    %v311 = vld [vmem:[#allocation2 + $0x1c8] sm:$0xf]
    %v312 = vld [vmem:[#allocation2 + $0x1cc] sm:$0xf]
    %v313 = vld [vmem:[#allocation2 + $0x1d0] sm:$0xf]
    %v314 = vld [vmem:[#allocation2 + $0x1d4] sm:$0xf]
    %v315 = vld [vmem:[#allocation2 + $0x1d8] sm:$0xf]
    %v316 = vld [vmem:[#allocation2 + $0x1dc] sm:$0xf]
    %v317 = vld [vmem:[#allocation2 + $0x1e0] sm:$0xf]
    %v318 = vld [vmem:[#allocation2 + $0x1e4] sm:$0xf]
    %v319 = vld [vmem:[#allocation2 + $0x1e8] sm:$0xf]
    %v320 = vld [vmem:[#allocation2 + $0x1ec] sm:$0xf]
    %v321 = vld [vmem:[#allocation2 + $0x1f0] sm:$0xf]
    %v322 = vld [vmem:[#allocation2 + $0x1f4] sm:$0xf]
    %v323 = vld [vmem:[#allocation2 + $0x1f8] sm:$0xf]
    %v324 = vld [vmem:[#allocation2 + $0x1fc] sm:$0xf]
    %v325 = vld [vmem:[%s2] sm:$0x1]
    %v327 = vlaneseq
    %v328 = vshrl.u32 %v327, 7
    %v329 = vsub.s32 0, %v328
    %v330 = vrot.slane %v325, %v329
    %v460 = vunpack.c.l.b16 %v197
    %v461 = vunpack.c.l.b16 %v198
    %v462 = vunpack.c.l.b16 %v199
    %v463 = vunpack.c.l.b16 %v200
    %v464 = vunpack.c.l.b16 %v201
    %v465 = vunpack.c.l.b16 %v202
    %v466 = vunpack.c.l.b16 %v203
    %v467 = vunpack.c.l.b16 %v204
    %v468 = vunpack.c.l.b16 %v205
    %v469 = vunpack.c.l.b16 %v206
    %v470 = vunpack.c.l.b16 %v207
    %v471 = vunpack.c.l.b16 %v208
    %v472 = vunpack.c.l.b16 %v209
    %v473 = vunpack.c.l.b16 %v210
    %v474 = vunpack.c.l.b16 %v211
    %v475 = vunpack.c.l.b16 %v212
    %v476 = vunpack.c.l.b16 %v213
    %v477 = vunpack.c.l.b16 %v214
    %v478 = vunpack.c.l.b16 %v215
    %v479 = vunpack.c.l.b16 %v216
    %v480 = vunpack.c.l.b16 %v217
    %v481 = vunpack.c.l.b16 %v218
    %v482 = vunpack.c.l.b16 %v219
    %v483 = vunpack.c.l.b16 %v220
    %v484 = vunpack.c.l.b16 %v221
    %v485 = vunpack.c.l.b16 %v222
    %v486 = vunpack.c.l.b16 %v223
    %v487 = vunpack.c.l.b16 %v224
    %v488 = vunpack.c.l.b16 %v225
    %v489 = vunpack.c.l.b16 %v226
    %v490 = vunpack.c.l.b16 %v227
    %v491 = vunpack.c.l.b16 %v228
    %v492 = vunpack.c.l.b16 %v229
    %v493 = vunpack.c.l.b16 %v230
    %v494 = vunpack.c.l.b16 %v231
    %v495 = vunpack.c.l.b16 %v232
    %v496 = vunpack.c.l.b16 %v233
    %v497 = vunpack.c.l.b16 %v234
    %v498 = vunpack.c.l.b16 %v235
    %v499 = vunpack.c.l.b16 %v236
    %v500 = vunpack.c.l.b16 %v237
    %v501 = vunpack.c.l.b16 %v238
    %v502 = vunpack.c.l.b16 %v239
    %v503 = vunpack.c.l.b16 %v240
    %v504 = vunpack.c.l.b16 %v241
    %v505 = vunpack.c.l.b16 %v242
    %v506 = vunpack.c.l.b16 %v243
    %v507 = vunpack.c.l.b16 %v244
    %v508 = vunpack.c.l.b16 %v245
    %v509 = vunpack.c.l.b16 %v246
    %v510 = vunpack.c.l.b16 %v247
    %v511 = vunpack.c.l.b16 %v248
    %v512 = vunpack.c.l.b16 %v249
    %v513 = vunpack.c.l.b16 %v250
    %v514 = vunpack.c.l.b16 %v251
    %v515 = vunpack.c.l.b16 %v252
    %v516 = vunpack.c.l.b16 %v253
    %v517 = vunpack.c.l.b16 %v254
    %v518 = vunpack.c.l.b16 %v255
    %v519 = vunpack.c.l.b16 %v256
    %v520 = vunpack.c.l.b16 %v257
    %v521 = vunpack.c.l.b16 %v258
    %v522 = vunpack.c.l.b16 %v259
    %v523 = vunpack.c.l.b16 %v260
    %v524 = vunpack.c.l.b16 %v261
    %v525 = vunpack.c.l.b16 %v262
    %v526 = vunpack.c.l.b16 %v263
    %v527 = vunpack.c.l.b16 %v264
    %v528 = vunpack.c.l.b16 %v265
    %v529 = vunpack.c.l.b16 %v266
    %v530 = vunpack.c.l.b16 %v267
    %v531 = vunpack.c.l.b16 %v268
    %v532 = vunpack.c.l.b16 %v269
    %v533 = vunpack.c.l.b16 %v270
    %v534 = vunpack.c.l.b16 %v271
    %v535 = vunpack.c.l.b16 %v272
    %v536 = vunpack.c.l.b16 %v273
    %v537 = vunpack.c.l.b16 %v274
    %v538 = vunpack.c.l.b16 %v275
    %v539 = vunpack.c.l.b16 %v276
    %v540 = vunpack.c.l.b16 %v277
    %v541 = vunpack.c.l.b16 %v278
    %v542 = vunpack.c.l.b16 %v279
    %v543 = vunpack.c.l.b16 %v280
    %v544 = vunpack.c.l.b16 %v281
    %v545 = vunpack.c.l.b16 %v282
    %v546 = vunpack.c.l.b16 %v283
    %v547 = vunpack.c.l.b16 %v284
    %v548 = vunpack.c.l.b16 %v285
    %v549 = vunpack.c.l.b16 %v286
    %v550 = vunpack.c.l.b16 %v287
    %v551 = vunpack.c.l.b16 %v288
    %v552 = vunpack.c.l.b16 %v289
    %v553 = vunpack.c.l.b16 %v290
    %v554 = vunpack.c.l.b16 %v291
    %v555 = vunpack.c.l.b16 %v292
    %v556 = vunpack.c.l.b16 %v293
    %v557 = vunpack.c.l.b16 %v294
    %v558 = vunpack.c.l.b16 %v295
    %v559 = vunpack.c.l.b16 %v296
    %v560 = vunpack.c.l.b16 %v297
    %v561 = vunpack.c.l.b16 %v298
    %v562 = vunpack.c.l.b16 %v299
    %v563 = vunpack.c.l.b16 %v300
    %v564 = vunpack.c.l.b16 %v301
    %v565 = vunpack.c.l.b16 %v302
    %v566 = vunpack.c.l.b16 %v303
    %v567 = vunpack.c.l.b16 %v304
    %v568 = vunpack.c.l.b16 %v305
    %v569 = vunpack.c.l.b16 %v306
    %v570 = vunpack.c.l.b16 %v307
    %v571 = vunpack.c.l.b16 %v308
    %v572 = vunpack.c.l.b16 %v309
    %v573 = vunpack.c.l.b16 %v310
    %v574 = vunpack.c.l.b16 %v311
    %v575 = vunpack.c.l.b16 %v312
    %v576 = vunpack.c.l.b16 %v313
    %v577 = vunpack.c.l.b16 %v314
    %v578 = vunpack.c.l.b16 %v315
    %v579 = vunpack.c.l.b16 %v316
    %v580 = vunpack.c.l.b16 %v317
    %v581 = vunpack.c.l.b16 %v318
    %v582 = vunpack.c.l.b16 %v319
    %v583 = vunpack.c.l.b16 %v320
    %v584 = vunpack.c.l.b16 %v321
    %v585 = vunpack.c.l.b16 %v322
    %v586 = vunpack.c.l.b16 %v323
    %v587 = vunpack.c.l.b16 %v324
    %v588 = vpack.c.b16 %v461, %v460
    %v589 = vpack.c.b16 %v463, %v462
    %v590 = vpack.c.b16 %v465, %v464
    %v591 = vpack.c.b16 %v467, %v466
    %v592 = vpack.c.b16 %v469, %v468
    %v593 = vpack.c.b16 %v471, %v470
    %v594 = vpack.c.b16 %v473, %v472
    %v595 = vpack.c.b16 %v475, %v474
    %v596 = vpack.c.b16 %v477, %v476
    %v597 = vpack.c.b16 %v479, %v478
    %v598 = vpack.c.b16 %v481, %v480
    %v599 = vpack.c.b16 %v483, %v482
    %v600 = vpack.c.b16 %v485, %v484
    %v601 = vpack.c.b16 %v487, %v486
    %v602 = vpack.c.b16 %v489, %v488
    %v603 = vpack.c.b16 %v491, %v490
    %v604 = vpack.c.b16 %v493, %v492
    %v605 = vpack.c.b16 %v495, %v494
    %v606 = vpack.c.b16 %v497, %v496
    %v607 = vpack.c.b16 %v499, %v498
    %v608 = vpack.c.b16 %v501, %v500
    %v609 = vpack.c.b16 %v503, %v502
    %v610 = vpack.c.b16 %v505, %v504
    %v611 = vpack.c.b16 %v507, %v506
    %v612 = vpack.c.b16 %v509, %v508
    %v613 = vpack.c.b16 %v511, %v510
    %v614 = vpack.c.b16 %v513, %v512
    %v615 = vpack.c.b16 %v515, %v514
    %v616 = vpack.c.b16 %v517, %v516
    %v617 = vpack.c.b16 %v519, %v518
    %v618 = vpack.c.b16 %v521, %v520
    %v619 = vpack.c.b16 %v523, %v522
    %v620 = vpack.c.b16 %v525, %v524
    %v621 = vpack.c.b16 %v527, %v526
    %v622 = vpack.c.b16 %v529, %v528
    %v623 = vpack.c.b16 %v531, %v530
    %v624 = vpack.c.b16 %v533, %v532
    %v625 = vpack.c.b16 %v535, %v534
    %v626 = vpack.c.b16 %v537, %v536
    %v627 = vpack.c.b16 %v539, %v538
    %v628 = vpack.c.b16 %v541, %v540
    %v629 = vpack.c.b16 %v543, %v542
    %v630 = vpack.c.b16 %v545, %v544
    %v631 = vpack.c.b16 %v547, %v546
    %v632 = vpack.c.b16 %v549, %v548
    %v633 = vpack.c.b16 %v551, %v550
    %v634 = vpack.c.b16 %v553, %v552
    %v635 = vpack.c.b16 %v555, %v554
    %v636 = vpack.c.b16 %v557, %v556
    %v637 = vpack.c.b16 %v559, %v558
    %v638 = vpack.c.b16 %v561, %v560
    %v639 = vpack.c.b16 %v563, %v562
    %v640 = vpack.c.b16 %v565, %v564
    %v641 = vpack.c.b16 %v567, %v566
    %v642 = vpack.c.b16 %v569, %v568
    %v643 = vpack.c.b16 %v571, %v570
    %v644 = vpack.c.b16 %v573, %v572
    %v645 = vpack.c.b16 %v575, %v574
    %v646 = vpack.c.b16 %v577, %v576
    %v647 = vpack.c.b16 %v579, %v578
    %v648 = vpack.c.b16 %v581, %v580
    %v649 = vpack.c.b16 %v583, %v582
    %v650 = vpack.c.b16 %v585, %v584
    %v651 = vpack.c.b16 %v587, %v586
    %716 = vmatprep.subr.bf16.mxu0 0
    %717 = vmatpush1.bf16.msra.mxu0 %v588
    %718 = vmatprep.subr.bf16.mxu0 0
    %719 = vmatpush1.bf16.msra.mxu0 %v589
    %720 = vmatprep.subr.bf16.mxu0 0
    %721 = vmatpush1.bf16.msra.mxu0 %v590
    %722 = vmatprep.subr.bf16.mxu0 0
    %723 = vmatpush1.bf16.msra.mxu0 %v591
    %724 = vmatprep.subr.bf16.mxu0 0
    %725 = vmatpush1.bf16.msra.mxu0 %v592
    %726 = vmatprep.subr.bf16.mxu0 0
    %727 = vmatpush1.bf16.msra.mxu0 %v593
    %728 = vmatprep.subr.bf16.mxu0 0
    %729 = vmatpush1.bf16.msra.mxu0 %v594
    %730 = vmatprep.subr.bf16.mxu0 0
    %731 = vmatpush1.bf16.msra.mxu0 %v595
    %732 = vmatprep.subr.bf16.mxu0 0
    %733 = vmatpush1.bf16.msra.mxu0 %v596
    %734 = vmatprep.subr.bf16.mxu0 0
    %735 = vmatpush1.bf16.msra.mxu0 %v597
    %736 = vmatprep.subr.bf16.mxu0 0
    %737 = vmatpush1.bf16.msra.mxu0 %v598
    %738 = vmatprep.subr.bf16.mxu0 0
    %739 = vmatpush1.bf16.msra.mxu0 %v599
    %740 = vmatprep.subr.bf16.mxu0 0
    %741 = vmatpush1.bf16.msra.mxu0 %v600
    %742 = vmatprep.subr.bf16.mxu0 0
    %743 = vmatpush1.bf16.msra.mxu0 %v601
    %744 = vmatprep.subr.bf16.mxu0 0
    %745 = vmatpush1.bf16.msra.mxu0 %v602
    %746 = vmatprep.subr.bf16.mxu0 0
    %747 = vmatpush1.bf16.msra.mxu0 %v603
    %748 = vmatprep.mubr.bf16.mxu0 %v190
    %749 = vmatmul.mubr.bf16.gmra.mrb[0].mxu0 %v189
    %v750 = vpop.f32.mrb[0].mxu0
    %v751 = vadd.f32 %v330, %v750
    %v752 = vpop.f32.mrb[0].mxu0
    %v753 = vpop.f32.mrb[0].mxu0
    %v754 = vpop.f32.mrb[0].mxu0
    %755 = vdwg.mxu0
    %756 = vmatprep.subr.bf16.mxu0 0
    %757 = vmatpush1.bf16.msra.mxu0 %v604
    %758 = vmatprep.subr.bf16.mxu0 0
    %759 = vmatpush1.bf16.msra.mxu0 %v605
    %760 = vmatprep.subr.bf16.mxu0 0
    %761 = vmatpush1.bf16.msra.mxu0 %v606
    %762 = vmatprep.subr.bf16.mxu0 0
    %763 = vmatpush1.bf16.msra.mxu0 %v607
    %764 = vmatprep.subr.bf16.mxu0 0
    %765 = vmatpush1.bf16.msra.mxu0 %v608
    %766 = vmatprep.subr.bf16.mxu0 0
    %767 = vmatpush1.bf16.msra.mxu0 %v609
    %768 = vmatprep.subr.bf16.mxu0 0
    %769 = vmatpush1.bf16.msra.mxu0 %v610
    %770 = vmatprep.subr.bf16.mxu0 0
    %771 = vmatpush1.bf16.msra.mxu0 %v611
    %772 = vmatprep.subr.bf16.mxu0 0
    %773 = vmatpush1.bf16.msra.mxu0 %v612
    %774 = vmatprep.subr.bf16.mxu0 0
    %775 = vmatpush1.bf16.msra.mxu0 %v613
    %776 = vmatprep.subr.bf16.mxu0 0
    %777 = vmatpush1.bf16.msra.mxu0 %v614
    %778 = vmatprep.subr.bf16.mxu0 0
    %779 = vmatpush1.bf16.msra.mxu0 %v615
    %780 = vmatprep.subr.bf16.mxu0 0
    %781 = vmatpush1.bf16.msra.mxu0 %v616
    %782 = vmatprep.subr.bf16.mxu0 0
    %783 = vmatpush1.bf16.msra.mxu0 %v617
    %784 = vmatprep.subr.bf16.mxu0 0
    %785 = vmatpush1.bf16.msra.mxu0 %v618
    %786 = vmatprep.subr.bf16.mxu0 0
    %787 = vmatpush1.bf16.msra.mxu0 %v619
    %788 = vmatprep.mubr.bf16.mxu0 %v192
    %789 = vmatmul.mubr.bf16.gmra.mrb[0].mxu0 %v191
    %v790 = vpop.f32.mrb[0].mxu0
    %v791 = vadd.f32 %v751, %v790
    %v792 = vpop.f32.mrb[0].mxu0
    %v793 = vpop.f32.mrb[0].mxu0
    %v794 = vpop.f32.mrb[0].mxu0
    %795 = vdwg.mxu0
    %796 = vmatprep.subr.bf16.mxu0 0
    %797 = vmatpush1.bf16.msra.mxu0 %v620
    %798 = vmatprep.subr.bf16.mxu0 0
    %799 = vmatpush1.bf16.msra.mxu0 %v621
    %800 = vmatprep.subr.bf16.mxu0 0
    %801 = vmatpush1.bf16.msra.mxu0 %v622
    %802 = vmatprep.subr.bf16.mxu0 0
    %803 = vmatpush1.bf16.msra.mxu0 %v623
    %804 = vmatprep.subr.bf16.mxu0 0
    %805 = vmatpush1.bf16.msra.mxu0 %v624
    %806 = vmatprep.subr.bf16.mxu0 0
    %807 = vmatpush1.bf16.msra.mxu0 %v625
    %808 = vmatprep.subr.bf16.mxu0 0
    %809 = vmatpush1.bf16.msra.mxu0 %v626
    %810 = vmatprep.subr.bf16.mxu0 0
    %811 = vmatpush1.bf16.msra.mxu0 %v627
    %812 = vmatprep.subr.bf16.mxu0 0
    %813 = vmatpush1.bf16.msra.mxu0 %v628
    %814 = vmatprep.subr.bf16.mxu0 0
    %815 = vmatpush1.bf16.msra.mxu0 %v629
    %816 = vmatprep.subr.bf16.mxu0 0
    %817 = vmatpush1.bf16.msra.mxu0 %v630
    %818 = vmatprep.subr.bf16.mxu0 0
    %819 = vmatpush1.bf16.msra.mxu0 %v631
    %820 = vmatprep.subr.bf16.mxu0 0
    %821 = vmatpush1.bf16.msra.mxu0 %v632
    %822 = vmatprep.subr.bf16.mxu0 0
    %823 = vmatpush1.bf16.msra.mxu0 %v633
    %824 = vmatprep.subr.bf16.mxu0 0
    %825 = vmatpush1.bf16.msra.mxu0 %v634
    %826 = vmatprep.subr.bf16.mxu0 0
    %827 = vmatpush1.bf16.msra.mxu0 %v635
    %828 = vmatprep.mubr.bf16.mxu0 %v194
    %829 = vmatmul.mubr.bf16.gmra.mrb[0].mxu0 %v193
    %v830 = vpop.f32.mrb[0].mxu0
    %v831 = vadd.f32 %v791, %v830
    %v832 = vpop.f32.mrb[0].mxu0
    %v833 = vpop.f32.mrb[0].mxu0
    %v834 = vpop.f32.mrb[0].mxu0
    %835 = vdwg.mxu0
    %836 = vmatprep.subr.bf16.mxu0 0
    %837 = vmatpush1.bf16.msra.mxu0 %v636
    %838 = vmatprep.subr.bf16.mxu0 0
    %839 = vmatpush1.bf16.msra.mxu0 %v637
    %840 = vmatprep.subr.bf16.mxu0 0
    %841 = vmatpush1.bf16.msra.mxu0 %v638
    %842 = vmatprep.subr.bf16.mxu0 0
    %843 = vmatpush1.bf16.msra.mxu0 %v639
    %844 = vmatprep.subr.bf16.mxu0 0
    %845 = vmatpush1.bf16.msra.mxu0 %v640
    %846 = vmatprep.subr.bf16.mxu0 0
    %847 = vmatpush1.bf16.msra.mxu0 %v641
    %848 = vmatprep.subr.bf16.mxu0 0
    %849 = vmatpush1.bf16.msra.mxu0 %v642
    %850 = vmatprep.subr.bf16.mxu0 0
    %851 = vmatpush1.bf16.msra.mxu0 %v643
    %852 = vmatprep.subr.bf16.mxu0 0
    %853 = vmatpush1.bf16.msra.mxu0 %v644
    %854 = vmatprep.subr.bf16.mxu0 0
    %855 = vmatpush1.bf16.msra.mxu0 %v645
    %856 = vmatprep.subr.bf16.mxu0 0
    %857 = vmatpush1.bf16.msra.mxu0 %v646
    %858 = vmatprep.subr.bf16.mxu0 0
    %859 = vmatpush1.bf16.msra.mxu0 %v647
    %860 = vmatprep.subr.bf16.mxu0 0
    %861 = vmatpush1.bf16.msra.mxu0 %v648
    %862 = vmatprep.subr.bf16.mxu0 0
    %863 = vmatpush1.bf16.msra.mxu0 %v649
    %864 = vmatprep.subr.bf16.mxu0 0
    %865 = vmatpush1.bf16.msra.mxu0 %v650
    %866 = vmatprep.subr.bf16.mxu0 0
    %867 = vmatpush1.bf16.msra.mxu0 %v651
    %868 = vmatprep.mubr.bf16.mxu0 %v196
    %869 = vmatmul.mubr.bf16.gmra.mrb[0].mxu0 %v195
    %v870 = vpop.f32.mrb[0].mxu0
    %v871 = vadd.f32 %v831, %v870
    %v872 = vpop.f32.mrb[0].mxu0
    %v873 = vpop.f32.mrb[0].mxu0
    %v874 = vpop.f32.mrb[0].mxu0
    %875 = vdwg.mxu0
    %876 = vst [vmem:[#allocation4] sm:$0xff] %v871
    // Predicated region
    $region18: #{trajectory_embedding.1} parent=1 // pred_check
      _
    $region19: #{trajectory_embedding.1} parent=1 // pred_check_branch
      %878 = sbr.rel (0) target = $region21
    $region20: #{trajectory_embedding.1} parent=1 // pred_region
      // Predicated region
      $region22: #{trajectory_embedding.1} parent=20 // pred_check
        _
      $region23: #{trajectory_embedding.1} parent=20 // pred_check_branch
        %880 = sbr.rel (0) target = $region25
      $region24: #{trajectory_embedding.1} parent=20 // pred_region
        // Predicated region
        $region26: #{trajectory_embedding.1} parent=24 // pred_check
          _
        $region27: #{trajectory_embedding.1} parent=24 // pred_check_branch
          %882 = sbr.rel target = $region29
        $region28: #{trajectory_embedding.1} parent=24 // pred_region
          // Predicated region
          $region41: #{trajectory_embedding.1} parent=28 // pred_check
            _
          $region42: #{trajectory_embedding.1} parent=28 // pred_check_branch
            %897 = sbr.rel (0) target = $region44
          $region43: #{trajectory_embedding.1} parent=28 // pred_region
            loop: start=0, step=1, limit=1
            $region45: #{trajectory_embedding.1} parent=43 // loop_pre_header
              _
            $region46: #{trajectory_embedding.1} parent=43 // loop_header
              %s900 = sphi 0, %s904
              %p901 = scmp.ge.s32.totalorder %s900, 1
              %s905 = sphi [#allocation4], [#allocation4]
              %s906 = sphi %s3, %s3
            $region47: #{trajectory_embedding.1} parent=43 // loop_header_branch
              %903 = sbr.rel (%p901) target = $region51
            $region48: #{trajectory_embedding.1} parent=43 // loop_body
              %v907 = vld [vmem:[%s905] sm:$0x1]
              %908 = vst [vmem:[%s906] sm:$0x1] %v907
            $region49: #{trajectory_embedding.1} parent=43 // loop_footer
              %s904 = sadd.s32 1, %s900
            $region50: #{trajectory_embedding.1} parent=43 // loop_footer_branch
              %899 = sbr.rel target = $region46
            $region51: #{trajectory_embedding.1} parent=43 // loop_exit
              _
          $region44: #{trajectory_embedding.1} parent=28 // pred_fallthru
            _
        $region29: #{trajectory_embedding.1} parent=24 // pred_fallthru
          _
        // Predicated region
        $region30: #{trajectory_embedding.1} parent=24 // pred_check
          _
        $region31: #{trajectory_embedding.1} parent=24 // pred_check_branch
          %884 = sbr.rel (0) target = $region33
        $region32: #{trajectory_embedding.1} parent=24 // pred_region
          loop: start=0, step=1, limit=1
          $region34: #{trajectory_embedding.1} parent=32 // loop_pre_header
            _
          $region35: #{trajectory_embedding.1} parent=32 // loop_header
            %s887 = sphi 0, %s891
            %p888 = scmp.ge.s32.totalorder %s887, 1
            %s892 = sphi [#allocation4], [#allocation4]
            %s893 = sphi %s3, %s3
          $region36: #{trajectory_embedding.1} parent=32 // loop_header_branch
            %890 = sbr.rel (%p888) target = $region40
          $region37: #{trajectory_embedding.1} parent=32 // loop_body
            %v894 = vld [vmem:[%s892] sm:$0x1]
            %895 = vst [vmem:[%s893] sm:$0x1] %v894
          $region38: #{trajectory_embedding.1} parent=32 // loop_footer
            %s891 = sadd.s32 1, %s887
          $region39: #{trajectory_embedding.1} parent=32 // loop_footer_branch
            %886 = sbr.rel target = $region35
          $region40: #{trajectory_embedding.1} parent=32 // loop_exit
            _
        $region33: #{trajectory_embedding.1} parent=24 // pred_fallthru
          _
      $region25: #{trajectory_embedding.1} parent=20 // pred_fallthru
        _
      %909 = vnop
    $region21: #{trajectory_embedding.1} parent=1 // pred_fallthru
      _
    // Predicated region
    $region52: #{trajectory_embedding.1} parent=1 // pred_check
      _
    $region53: #{trajectory_embedding.1} parent=1 // pred_check_branch
      %911 = sbr.rel (0) target = $region55
    $region54: #{trajectory_embedding.1} parent=1 // pred_region
      _
    $region55: #{trajectory_embedding.1} parent=1 // pred_fallthru
      _
    %912 = vsyncpa [#allocation3], 1

</llo_original>
